<compile_context>
chip_gen: v5e
topology: v5e:2x2
jax: 0.10.0
libtpu: 0.0.40
codegen_flags: <defaults>
</compile_context>

<pallas_src>
import math

import jax
import jax.numpy as jnp
from jax.experimental import pallas as pl
from jax.experimental.pallas import tpu as pltpu


def _time2vec_kernel(tau_ref, w_ref, b_ref, mask_ref, o_ref):
    """One fused multiply-add + sin/select pass over a lane-dense tile.

    tau_ref : (tm, r)      r tau values per output row-group
    w_ref   : (r, G)       block-diagonal fused weights, G = r * F
    b_ref   : (1, G)       fused bias, tiled r times
    mask_ref: (1, G)       1.0 where sin() applies, 0.0 on the linear lane
    o_ref   : (tm, G)
    """
    t = tau_ref[...].astype(jnp.float32)          # (tm, r)
    w = w_ref[...]                                # (r, G) f32
    r = w.shape[0]

    # Lane expansion + weight multiply as r broadcast-FMAs on the VPU.
    # (w row k is zero outside lanes [k*F, (k+1)*F), so this reproduces
    #  y[j, k*F + f] = tau[j, k] * w[f].)
    acc = t[:, 0:1] * w[0:1, :]                   # (tm, G)
    for k in range(1, r):                         # unrolled, r <= 8
        acc = acc + t[:, k:k + 1] * w[k:k + 1, :]
    y = acc + b_ref[...]                          # (tm, G) f32

    o_ref[...] = jnp.where(mask_ref[...] != 0.0, jnp.sin(y), y).astype(o_ref.dtype)


def _choose_row_tile(rows, lane_width):
    """Row tile targeting ~2 MiB of f32 output per block (>=85% HBM roofline),
    with a >=2-tile split for medium inputs so both v7x TensorCores get work."""
    padded_lanes = ((lane_width + 127) // 128) * 128
    bytes_per_row = 4 * padded_lanes
    target = max(8, ((2 * 1024 * 1024) // bytes_per_row) // 8 * 8)
    if rows > target:
        return target
    if rows >= 16 and rows * bytes_per_row > (1 << 20):
        half = (rows + 1) // 2
        return ((half + 7) // 8) * 8
    return rows


def sine_activation1(tau, w1, b1, w2, b2):
    """SineActivation1 forward.

    tau: arbitrary shape (...,).
    w1: (F-1, 1), b1: (F-1,)   -- nn.Linear(1, F-1) params (PyTorch (out, in))
    w2: (1, 1),  b2: (1,)      -- nn.Linear(1, 1)    params
    returns: (..., F) with F = (F-1) + 1
    """
    n_sin = int(w1.shape[0])
    out_features = n_sin + 1
    out_dtype = tau.dtype

    orig_shape = tau.shape
    m = int(math.prod(orig_shape)) if orig_shape else 1

    # Fuse the two in_features==1 linears into one (F,) weight / bias row.
    # Keep params in f32; compute in f32; cast only at the store.
    w_row = jnp.concatenate([w1.reshape(-1), w2.reshape(-1)]).astype(jnp.float32)
    b_row = jnp.concatenate([b1.reshape(-1), b2.reshape(-1)]).astype(jnp.float32)
    sin_mask = (jnp.arange(out_features) < n_sin).astype(jnp.float32)

    # Lane-dense grouping: view (m, F) as (m/r, r*F) with r = 128/gcd(F,128),
    # which is always a multiple of 128 lanes.  Only take it when the
    # redundancy factor r is small and m is divisible by r.
    g = math.gcd(out_features, 128)
    r = 128 // g
    if r <= 8 and m >= r and m % r == 0:
        rows = m // r
    else:
        r = 1                                      # fallback: plain (m, F) tiles
        rows = m
    lane_width = r * out_features

    # Block-diagonal (r, r*F) weights; bias/mask tiled r times along lanes.
    w_blk = (jnp.eye(r, dtype=jnp.float32)[:, :, None]
             * w_row[None, None, :]).reshape(r, lane_width)
    b_blk = jnp.tile(b_row, r).reshape(1, lane_width)
    mask_blk = jnp.tile(sin_mask, r).reshape(1, lane_width)

    tau_2d = tau.reshape(rows, r)                  # free view of contiguous tau

    tm = _choose_row_tile(rows, lane_width)
    num_tiles = pl.cdiv(rows, tm)                  # ragged last block is masked

    out = pl.pallas_call(
        _time2vec_kernel,
        out_shape=jax.ShapeDtypeStruct((rows, lane_width), out_dtype),
        grid=(num_tiles,),
        in_specs=[
            pl.BlockSpec((tm, r), lambda i: (i, 0)),             # tau rows
            pl.BlockSpec((r, lane_width), lambda i: (0, 0)),     # fused weights
            pl.BlockSpec((1, lane_width), lambda i: (0, 0)),     # fused bias
            pl.BlockSpec((1, lane_width), lambda i: (0, 0)),     # sin mask
        ],
        out_specs=pl.BlockSpec((tm, lane_width), lambda i: (i, 0)),
        compiler_params=pltpu.CompilerParams(
            dimension_semantics=("parallel",),
        ),
    )(tau_2d, w_blk, b_blk, mask_blk)

    # (rows, r*F) -> (..., F): contiguous row-major, so this reshape is free.
    return out.reshape(*orig_shape, out_features)


def _reference(tau, w1, b1, w2, b2):
    # Pure-JAX reference matching the PyTorch module.
    t = tau[..., None].astype(jnp.float32)
    v1 = jnp.sin(t @ w1.astype(jnp.float32).T + b1.astype(jnp.float32))
    v2 = t @ w2.astype(jnp.float32).T + b2.astype(jnp.float32)
    return jnp.concatenate([v1, v2], axis=-1).astype(tau.dtype)


if __name__ == "__main__":
    key = jax.random.PRNGKey(0)
    B, S, F = 2, 8, 32            # batch, seq_len, out_features

    k_tau, k_w1, k_b1, k_w2, k_b2 = jax.random.split(key, 5)
    tau = jax.random.normal(k_tau, (B, S), dtype=jnp.float32)

    # nn.Linear default init: U(-1/sqrt(in), 1/sqrt(in)); in_features == 1.
    w1 = jax.random.uniform(k_w1, (F - 1, 1), jnp.float32, -1.0, 1.0)
    b1 = jax.random.uniform(k_b1, (F - 1,), jnp.float32, -1.0, 1.0)
    w2 = jax.random.uniform(k_w2, (1, 1), jnp.float32, -1.0, 1.0)
    b2 = jax.random.uniform(k_b2, (1,), jnp.float32, -1.0, 1.0)

    out = jax.block_until_ready(sine_activation1(tau, w1, b1, w2, b2))

    ref = _reference(tau, w1, b1, w2, b2)
    assert out.shape == (B, S, F)
    assert jnp.allclose(out, ref, atol=1e-5, rtol=1e-5), "mismatch vs reference"

    print("KERNEL_OK")
</pallas_src>

<mosaic_0001>
module attributes {stable_mosaic.version = 11 : i64} {
  func.func @_time2vec_kernel(%arg0: i32, %arg1: memref<4x4xf32, #tpu.memory_space<vmem>>, %arg2: memref<4x128xf32, #tpu.memory_space<vmem>>, %arg3: memref<1x128xf32, #tpu.memory_space<vmem>>, %arg4: memref<1x128xf32, #tpu.memory_space<vmem>>, %arg5: memref<4x128xf32, #tpu.memory_space<vmem>>) attributes {dimension_semantics = [#tpu.dimension_semantics<parallel>], iteration_bounds = array<i64: 1>, scalar_prefetch = 0 : i64, scratch_operands = 0 : i64, tpu.core_type = #tpu.core_type<tc>, window_params = [{transform_indices = @transform_0, window_bounds = array<i64: 4, 4>}, {pipeline_mode = #tpu.pipeline_mode<synchronous>, transform_indices = @transform_1, window_bounds = array<i64: 4, 128>}, {pipeline_mode = #tpu.pipeline_mode<synchronous>, transform_indices = @transform_2, window_bounds = array<i64: 1, 128>}, {pipeline_mode = #tpu.pipeline_mode<synchronous>, transform_indices = @transform_3, window_bounds = array<i64: 1, 128>}, {transform_indices = @transform_4, window_bounds = array<i64: 4, 128>}]} {
    %c0 = arith.constant 0 : index
    %c0_0 = arith.constant 0 : index
    %0 = vector.load %arg1[%c0, %c0_0] : memref<4x4xf32, #tpu.memory_space<vmem>>, vector<4x4xf32>
    %c0_1 = arith.constant 0 : index
    %c0_2 = arith.constant 0 : index
    %1 = vector.load %arg2[%c0_1, %c0_2] : memref<4x128xf32, #tpu.memory_space<vmem>>, vector<4x128xf32>
    %2 = vector.extract_strided_slice %0 {offsets = [0, 0], sizes = [4, 1], strides = [1, 1]} : vector<4x4xf32> to vector<4x1xf32>
    %3 = vector.extract_strided_slice %1 {offsets = [0, 0], sizes = [1, 128], strides = [1, 1]} : vector<4x128xf32> to vector<1x128xf32>
    %4 = vector.broadcast %2 : vector<4x1xf32> to vector<4x128xf32>
    %5 = vector.broadcast %3 : vector<1x128xf32> to vector<4x128xf32>
    %6 = arith.mulf %4, %5 : vector<4x128xf32>
    %7 = vector.extract_strided_slice %0 {offsets = [0, 1], sizes = [4, 1], strides = [1, 1]} : vector<4x4xf32> to vector<4x1xf32>
    %8 = vector.extract_strided_slice %1 {offsets = [1, 0], sizes = [1, 128], strides = [1, 1]} : vector<4x128xf32> to vector<1x128xf32>
    %9 = vector.broadcast %7 : vector<4x1xf32> to vector<4x128xf32>
    %10 = vector.broadcast %8 : vector<1x128xf32> to vector<4x128xf32>
    %11 = arith.mulf %9, %10 : vector<4x128xf32>
    %12 = arith.addf %6, %11 : vector<4x128xf32>
    %13 = vector.extract_strided_slice %0 {offsets = [0, 2], sizes = [4, 1], strides = [1, 1]} : vector<4x4xf32> to vector<4x1xf32>
    %14 = vector.extract_strided_slice %1 {offsets = [2, 0], sizes = [1, 128], strides = [1, 1]} : vector<4x128xf32> to vector<1x128xf32>
    %15 = vector.broadcast %13 : vector<4x1xf32> to vector<4x128xf32>
    %16 = vector.broadcast %14 : vector<1x128xf32> to vector<4x128xf32>
    %17 = arith.mulf %15, %16 : vector<4x128xf32>
    %18 = arith.addf %12, %17 : vector<4x128xf32>
    %19 = vector.extract_strided_slice %0 {offsets = [0, 3], sizes = [4, 1], strides = [1, 1]} : vector<4x4xf32> to vector<4x1xf32>
    %20 = vector.extract_strided_slice %1 {offsets = [3, 0], sizes = [1, 128], strides = [1, 1]} : vector<4x128xf32> to vector<1x128xf32>
    %21 = vector.broadcast %19 : vector<4x1xf32> to vector<4x128xf32>
    %22 = vector.broadcast %20 : vector<1x128xf32> to vector<4x128xf32>
    %23 = arith.mulf %21, %22 : vector<4x128xf32>
    %24 = arith.addf %18, %23 : vector<4x128xf32>
    %c0_3 = arith.constant 0 : index
    %c0_4 = arith.constant 0 : index
    %25 = vector.load %arg3[%c0_3, %c0_4] : memref<1x128xf32, #tpu.memory_space<vmem>>, vector<1x128xf32>
    %26 = vector.broadcast %25 : vector<1x128xf32> to vector<4x128xf32>
    %27 = arith.addf %24, %26 : vector<4x128xf32>
    %c0_5 = arith.constant 0 : index
    %c0_6 = arith.constant 0 : index
    %28 = vector.load %arg4[%c0_5, %c0_6] : memref<1x128xf32, #tpu.memory_space<vmem>>, vector<1x128xf32>
    %cst = arith.constant 0.000000e+00 : f32
    %29 = vector.broadcast %cst : f32 to vector<1x128xf32>
    %30 = arith.cmpf one, %28, %29 : vector<1x128xf32>
    %31 = math.sin %27 : vector<4x128xf32>
    %32 = vector.shape_cast %30 : vector<1x128xi1> to vector<1x128xi1>
    %33 = vector.broadcast %32 : vector<1x128xi1> to vector<4x128xi1>
    %34 = arith.select %33, %31, %27 : vector<4x128xi1>, vector<4x128xf32>
    %c0_7 = arith.constant 0 : index
    %c0_8 = arith.constant 0 : index
    %35 = vector.load %arg5[%c0_7, %c0_8] : memref<4x128xf32, #tpu.memory_space<vmem>>, vector<4x128xf32>
    tpu.vector_store %arg5[%c0_7, %c0_8], %34 {strides = array<i32>} : memref<4x128xf32, #tpu.memory_space<vmem>>, vector<4x128xf32>,
    return
  }
  func.func @transform_0(%arg0: i32) -> (i32, i32) {
    %c0_i32 = arith.constant 0 : i32
    %c0_i32_0 = arith.constant 0 : i32
    return %arg0, %c0_i32 : i32, i32
  }
  func.func @transform_1(%arg0: i32) -> (i32, i32) {
    %c0_i32 = arith.constant 0 : i32
    %c0_i32_0 = arith.constant 0 : i32
    %c0_i32_1 = arith.constant 0 : i32
    return %c0_i32, %c0_i32_0 : i32, i32
  }
  func.func @transform_2(%arg0: i32) -> (i32, i32) {
    %c0_i32 = arith.constant 0 : i32
    %c0_i32_0 = arith.constant 0 : i32
    %c0_i32_1 = arith.constant 0 : i32
    return %c0_i32, %c0_i32_0 : i32, i32
  }
  func.func @transform_3(%arg0: i32) -> (i32, i32) {
    %c0_i32 = arith.constant 0 : i32
    %c0_i32_0 = arith.constant 0 : i32
    %c0_i32_1 = arith.constant 0 : i32
    return %c0_i32, %c0_i32_0 : i32, i32
  }
  func.func @transform_4(%arg0: i32) -> (i32, i32) {
    %c0_i32 = arith.constant 0 : i32
    %c0_i32_0 = arith.constant 0 : i32
    return %arg0, %c0_i32 : i32, i32
  }
}

</mosaic_0001>

<llo_original>
// kernel: tpu_custom_call.1
$region0: #{tpu_custom_call.1}
  #allocation0 [shape = 'u32[]', space=smem, size = 0x4, offset = 0x4, fixed_abs, tag = 'smem constant byte address 0x4 - core index']
  #allocation1 [shape = 'u32[72,128]{1,0:T(1,128)}', space=vmem, size = 0x9000, scoped, tag = 'internal scratch']
  %s0 = inlined_call_operand.hbm [shape: f32[4,4], index: 0, kind: input, shape index: {}]
  %s1 = inlined_call_operand.hbm [shape: f32[4,128], index: 1, kind: input, shape index: {}]
  %s2 = inlined_call_operand.vmem [shape: f32[1,128], index: 2, kind: input, shape index: {}]
  %s3 = inlined_call_operand.vmem [shape: f32[1,128], index: 3, kind: input, shape index: {}]
  %s4 = inlined_call_operand.hbm [shape: f32[4,128], index: 4, kind: output, shape index: {}]
  %s5 = sld [smem:[#allocation0]]
  $region34: #{tpu_custom_call.1} parent=0
    _
  %s7 = ssub.s32 1, %s5
  %s8 = scalar_select 0, %s7, %s5
  $region1: #{tpu_custom_call.1} parent=0
    #allocation2 [shape = 'u8[2048]{0}', space=vmem, size = 0x800, scoped, tag = 'input window, operand 0, single buffered']
    #allocation3 [shape = 's32[1]{0}', space=sflag, size = 0x4, scoped, tag = 'scoped memory for tpu_custom_call.1']
    #allocation4 [shape = 's32[1]{0}', space=sflag, size = 0x4, scoped, tag = 'scoped memory for tpu_custom_call.1']
    #allocation5 [shape = 'u8[2048]{0}', space=vmem, size = 0x800, scoped, tag = 'input window, operand 1, single buffered']
    #allocation6 [shape = 's32[1]{0}', space=sflag, size = 0x4, scoped, tag = 'scoped memory for tpu_custom_call.1']
    #allocation7 [shape = 'u8[2048]{0}', space=vmem, size = 0x800, scoped, tag = 'output window, operand 0, single buffered']
    %9 = vsyncpa [#allocation3], 0
    %10 = vsyncpa [#allocation6], 0
    %11 = vsyncpa [#allocation4], 0
    // Predicated region
    $region2: #{tpu_custom_call.1} parent=1 // pred_check
      _
    $region3: #{tpu_custom_call.1} parent=1 // pred_check_branch
      %13 = sbr.rel (0) target = $region5
    $region4: #{tpu_custom_call.1} parent=1 // pred_region
      %15 = vsyncadd [#allocation3], 0
      %s17 = sshll.u32 %s0, 4
      %s18 = int_to_ptr.hbm [resolvable:$true] %s17
      %s19 = sshll.u32 [#allocation2], 4
      %s20 = int_to_ptr.vmem [resolvable:$true] %s19
      %22 = dma.hbm_to_vmem [thread:$0]  %s18, 64, %s20, [#allocation3]
    $region5: #{tpu_custom_call.1} parent=1 // pred_fallthru
      _
    // Predicated region
    $region6: #{tpu_custom_call.1} parent=1 // pred_check
      _
    $region7: #{tpu_custom_call.1} parent=1 // pred_check_branch
      %24 = sbr.rel (0) target = $region9
    $region8: #{tpu_custom_call.1} parent=1 // pred_region
      %26 = vsyncadd [#allocation6], 0
      %s28 = sshll.u32 %s1, 4
      %s29 = int_to_ptr.hbm [resolvable:$true] %s28
      %s30 = sshll.u32 [#allocation5], 4
      %s31 = int_to_ptr.vmem [resolvable:$true] %s30
      %33 = dma.hbm_to_vmem [thread:$0]  %s29, 64, %s31, [#allocation6]
    $region9: #{tpu_custom_call.1} parent=1 // pred_fallthru
      _
    // Predicated region
    $region10: #{tpu_custom_call.1} parent=1 // pred_check
      _
    $region11: #{tpu_custom_call.1} parent=1 // pred_check_branch
      %35 = sbr.rel (0) target = $region13
    $region12: #{tpu_custom_call.1} parent=1 // pred_region
      _
    $region13: #{tpu_custom_call.1} parent=1 // pred_fallthru
      _
    // Predicated region
    $region14: #{tpu_custom_call.1} parent=1 // pred_check
      _
    $region15: #{tpu_custom_call.1} parent=1 // pred_check_branch
      %37 = sbr.rel (0) target = $region17
    $region16: #{tpu_custom_call.1} parent=1 // pred_region
      _
    $region17: #{tpu_custom_call.1} parent=1 // pred_fallthru
      _
    // Predicated region
    $region18: #{tpu_custom_call.1} parent=1 // pred_check
      _
    $region19: #{tpu_custom_call.1} parent=1 // pred_check_branch
      %39 = sbr.rel (0) target = $region21
    $region20: #{tpu_custom_call.1} parent=1 // pred_region
      %41 = dma.done [#allocation3], 64
    $region21: #{tpu_custom_call.1} parent=1 // pred_fallthru
      _
    // Predicated region
    $region22: #{tpu_custom_call.1} parent=1 // pred_check
      _
    $region23: #{tpu_custom_call.1} parent=1 // pred_check_branch
      %43 = sbr.rel (0) target = $region25
    $region24: #{tpu_custom_call.1} parent=1 // pred_region
      %45 = dma.done [#allocation6], 64
    $region25: #{tpu_custom_call.1} parent=1 // pred_fallthru
      _
    %v46 = vld [vmem:[#allocation2] sm:$0xf]
    %v47 = vld [vmem:[#allocation5] sm:$0xf]
    %49 = vset.pattern.permute.xlu0 0
    %50 = vperm.xlu0 %49, %v46
    %v51 = vpop.permute.xlu0 %50
    %v53 = vperm.slane %v47, 0
    %v54 = vmul.f32 %v51, %v53
    %55 = vset.pattern.permute.xlu0 1
    %56 = vperm.xlu0 %55, %v46
    %v57 = vpop.permute.xlu0 %56
    %v59 = vperm.slane %v47, 1
    %v60 = vmul.f32 %v57, %v59
    %v61 = vadd.f32 %v54, %v60
    %62 = vset.pattern.permute.xlu0 2
    %63 = vperm.xlu0 %62, %v46
    %v64 = vpop.permute.xlu0 %63
    %v66 = vperm.slane %v47, 2
    %v67 = vmul.f32 %v64, %v66
    %v68 = vadd.f32 %v61, %v67
    %69 = vset.pattern.permute.xlu0 3
    %70 = vperm.xlu0 %69, %v46
    %v71 = vpop.permute.xlu0 %70
    %v73 = vperm.slane %v47, 3
    %v74 = vmul.f32 %v71, %v73
    %v75 = vadd.f32 %v68, %v74
    %v76 = vld [vmem:[%s2] sm:$0x1]
    %v78 = vperm.slane %v76, 0
    %v80 = vadd.f32 %v75, %v78
    %v81 = vld [vmem:[%s3] sm:$0x1]
    %vm82 = vcmp.ne.f32.partialorder %v81, 0.0
    %v83 = vand.u32 2147483647, %v80
    %vm84 = vcmp.le.f32.partialorder %v83, 0.7853982
    %vm85 = vcmp.lt.s32.totalorder %v80, 0
    %v86 = vand.u32 %v80, 2139095040
    %v87 = vshrl.u32 %v86, 23
    %v88 = vsub.s32 %v87, 127
    %v89 = vand.u32 2147483647, %v80
    %v90 = vand.u32 %v89, 8388607
    %v91 = vor.u32 %v90, 8388608
    %v92 = vsub.s32 0, %v91
    %v93 = vadd.s32 %v88, 1
    %vm94 = vcmp.gt.s32.totalorder %v93, 0
    %v95 = vsel %vm94, %v93, 0
    %v96 = vshrl.u32 %v95, 5
    %v97 = vand.u32 %v95, 31
    %v98 = vsub.s32 32, %v97
    %v99 = vshrl.u32 683565275, %v98
    %v100 = vshll.u32 683565275, %v97
    %v101 = vshrl.u32 2475754826, %v98
    %v102 = vor.u32 %v100, %v101
    %v103 = vshll.u32 2475754826, %v97
    %v104 = vshrl.u32 2131351028, %v98
    %v105 = vor.u32 %v103, %v104
    %v106 = vshll.u32 2131351028, %v97
    %v107 = vshrl.u32 2102212464, %v98
    %v108 = vor.u32 %v106, %v107
    %v109 = vshll.u32 2102212464, %v97
    %v110 = vshrl.u32 920167782, %v98
    %v111 = vor.u32 %v109, %v110
    %v112 = vshll.u32 920167782, %v97
    %v113 = vshrl.u32 1326507024, %v98
    %v114 = vor.u32 %v112, %v113
    %vm115 = vcmp.lt.s32.totalorder %v96, 1
    %vm116 = vcmp.lt.s32.totalorder %v96, 2
    %vm117 = vcmp.lt.s32.totalorder %v96, 3
    %vm118 = vcmp.lt.s32.totalorder %v96, 4
    %v119 = vsel %vm115, %v99, %v102
    %v120 = vsel %vm118, %v108, 2102212464
    %v121 = vsel %vm117, %v105, %v120
    %v122 = vsel %vm116, %v119, %v121
    %v123 = vsel %vm115, %v102, %v105
    %v124 = vsel %vm118, %v111, 920167782
    %v125 = vsel %vm117, %v108, %v124
    %v126 = vsel %vm116, %v123, %v125
    %v127 = vsel %vm115, %v105, %v108
    %v128 = vsel %vm118, %v114, 1326507024
    %v129 = vsel %vm117, %v111, %v128
    %v130 = vsel %vm116, %v127, %v129
    %v131 = vshll.u32 %v91, 8
    %v132 = vand.u32 %v131, 65535
    %v133 = vshrl.u32 %v131, 16
    %v134 = vand.u32 %v130, 65535
    %v135 = vshrl.u32 %v130, 16
    %v136 = vmul.u32 %v132, %v134
    %v137 = vmul.u32 %v132, %v135
    %v138 = vmul.u32 %v133, %v134
    %v139 = vmul.u32 %v133, %v135
    %v140 = vshll.u32 %v137, 16
    %v141 = vshrl.u32 %v137, 16
    %v142 = vshll.u32 %v138, 16
    %v143 = vshrl.u32 %v138, 16
    %vm144 = vc.u32 %v136, %v140
    %v145 = vsel %vm144, 1, 0
    %v146 = vadd.s32 %v136, %v140
    %v147 = vadd.s32 %v139, %v145
    %vm148 = vc.u32 %v146, %v142
    %v149 = vsel %vm148, 1, 0
    %v150 = vadd.s32 %v146, %v142
    %v151 = vadd.s32 %v147, %v149
    %v152 = vadd.s32 %v151, %v141
    %v153 = vadd.s32 %v152, %v143
    %v154 = vand.u32 %v131, 65535
    %v155 = vshrl.u32 %v131, 16
    %v156 = vand.u32 %v126, 65535
    %v157 = vshrl.u32 %v126, 16
    %v158 = vmul.u32 %v154, %v156
    %v159 = vmul.u32 %v154, %v157
    %v160 = vmul.u32 %v155, %v156
    %v161 = vmul.u32 %v155, %v157
    %v162 = vshll.u32 %v159, 16
    %v163 = vshrl.u32 %v159, 16
    %v164 = vshll.u32 %v160, 16
    %v165 = vshrl.u32 %v160, 16
    %vm166 = vc.u32 %v158, %v162
    %v167 = vsel %vm166, 1, 0
    %v168 = vadd.s32 %v158, %v162
    %v169 = vadd.s32 %v161, %v167
    %vm170 = vc.u32 %v168, %v164
    %v171 = vsel %vm170, 1, 0
    %v172 = vadd.s32 %v168, %v164
    %v173 = vadd.s32 %v169, %v171
    %v174 = vadd.s32 %v173, %v163
    %v175 = vadd.s32 %v174, %v165
    %v176 = vmul.u32 %v131, %v122
    %v177 = vadd.s32 %v153, %v172
    %vm178 = vc.u32 %v153, %v172
    %v179 = vadd.s32 %v175, 1
    %v180 = vsel %vm178, %v179, %v175
    %v181 = vadd.s32 %v176, %v180
    %v182 = vadd.s32 %v181, 536870912
    %v183 = vshrl.u32 %v182, 30
    %v184 = vshll.u32 %v183, 30
    %v185 = vsub.s32 %v181, %v184
    %vm186 = vcmp.lt.s32.totalorder %v185, 0
    %v187 = vsub.s32 0, %v185
    %v188 = vsel %vm186, %v187, %v185
    %v189 = vclz %v188
    %v190 = vsub.s32 %v189, 2
    %vm191 = vcmp.gt.s32.totalorder 0, %v190
    %v192 = vsel %vm191, 0, %v190
    %v193 = vsub.s32 32, %v192
    %v194 = vshll.u32 %v185, %v192
    %v195 = vshrl.u32 %v177, %v193
    %v196 = vor.u32 %v194, %v195
    %v197 = vsub.s32 4294967266, %v192
    %v198 = vadd.s32 %v197, 127
    %v199 = vshll.u32 %v198, 23
    %v200 = vor.u32 4788187, %v199
    %v201 = vand.u32 2147483647, %v200
    %v203 = vcvt.s32.f32 %v196
    %v204 = vmul.f32 %v203, %v201
    %v205 = vxor.u32 %v204, 2147483648
    %v206 = vsel %vm85, %v205, %v204
    %v207 = vsub.s32 4, %v183
    %v208 = vsel %vm85, %v207, %v183
    %v209 = vsel %vm84, %v80, %v206
    %v210 = vsel %vm84, 0, %v208
    %v211 = vmul.f32 %v209, %v209
    %v212 = vmul.f32 %v211, -0.001358992
    %v213 = vadd.f32 %v212, 0.041655596
    %v214 = vmul.f32 %v211, %v213
    %v215 = vadd.f32 %v214, -0.4999988
    %v216 = vmul.f32 %v211, %v215
    %v217 = vadd.f32 1.0, %v216
    %v218 = vmul.f32 %v209, %v209
    %v219 = vmul.f32 %v218, -0.00019511016
    %v220 = vadd.f32 %v219, 0.008332121
    %v221 = vmul.f32 %v218, %v220
    %v222 = vadd.f32 %v221, -0.16666654
    %v223 = vmul.f32 %v218, %v222
    %v224 = vadd.f32 %v223, 1.0
    %v225 = vmul.f32 %v224, %v209
    %vm226 = vweird.f32 %v80
    %v227 = vadd.s32 %v210, 3
    %v228 = vand.u32 %v227, 3
    %vm229 = vcmp.lt.s32.totalorder %v228, 2
    %vm230 = vcmp.eq.s32.totalorder %v228, 0
    %v231 = vxor.u32 %v225, 2147483648
    %v232 = vsel %vm230, %v217, %v231
    %vm233 = vcmp.eq.s32.totalorder %v228, 2
    %v234 = vxor.u32 %v217, 2147483648
    %v235 = vsel %vm233, %v234, %v225
    %v236 = vsel %vm229, %v232, %v235
    %v237 = vsel %vm226, nan, %v236
    %v238 = vsel %vm82, 1, 0
    %v239 = vperm.slane %v238, 0
    %vm240 = vcmp.eq.s32.totalorder %v239, 1
    %v241 = vsel %vm240, %v237, %v80
    %242 = vst [vmem:[#allocation7] sm:$0xf] %v241
    // Predicated region
    $region26: #{tpu_custom_call.1} parent=1 // pred_check
      _
    $region27: #{tpu_custom_call.1} parent=1 // pred_check_branch
      %244 = sbr.rel (0) target = $region29
    $region28: #{tpu_custom_call.1} parent=1 // pred_region
      %246 = vsyncadd [#allocation4], 0
      %s248 = sshll.u32 [#allocation7], 4
      %s249 = int_to_ptr.vmem [resolvable:$true] %s248
      %s250 = sshll.u32 %s4, 4
      %s251 = int_to_ptr.hbm [resolvable:$true] %s250
      %253 = dma.vmem_to_hbm [thread:$0]  %s249, 64, %s251, [#allocation4]
    $region29: #{tpu_custom_call.1} parent=1 // pred_fallthru
      _
    // Predicated region
    $region30: #{tpu_custom_call.1} parent=1 // pred_check
      _
    $region31: #{tpu_custom_call.1} parent=1 // pred_check_branch
      %255 = sbr.rel (0) target = $region33
    $region32: #{tpu_custom_call.1} parent=1 // pred_region
      %257 = dma.done [#allocation4], 64
    $region33: #{tpu_custom_call.1} parent=1 // pred_fallthru
      _
    %258 = vsyncpa [#allocation3], 1
    %259 = vsyncpa [#allocation6], 1
    %260 = vsyncpa [#allocation4], 1

</llo_original>
